<compile_context>
chip_gen: v6e
topology: v6e:2x2x1
jax: 0.10.0
libtpu: 0.0.40
codegen_flags: <defaults>
</compile_context>

<pallas_src>
import jax
import jax.numpy as jnp
from jax.experimental import pallas as pl
from jax.experimental.pallas import tpu as pltpu

# Problem sizes implied by the module (CartPole-like env):
OBSERVE_STATES = 4    # env.observation_space.shape[0]
ALL_ACTIONS = 2       # env.action_space.n
HIDDEN = 50

# Padded (lane/sublane aligned) sizes used inside the kernel:
HIDDEN_PAD = 128      # hidden 50 -> 128 (zero-padded; ReLU keeps zeros zero)
ACT_PAD = 128         # actions 2 -> 128 (zero-padded; sliced off in wrapper)
MAX_TILE_B = 256      # row tile for large batches (parallel grid axis)

BATCH = 32            # DQN replay minibatch run through a single call


def _round_up(n, m):
    return ((n + m - 1) // m) * m


def _net_kernel(x_ref, w1_ref, b1_ref, w2_ref, b2_ref, out_ref):
    # x_ref:  [TB, OBS]          w1_ref: [OBS, Hp]    b1_ref: [1, Hp]
    # w2_ref: [Hp, Ap]           b2_ref: [1, Ap]      out_ref: [TB, Ap]
    x = x_ref[...]
    obs = x_ref.shape[1]  # static python int (4) -> fully unrolled below

    # fc1 on the VPU: a K=4 contraction wastes an MXU pass, so do it as
    # 4 unrolled rank-1 broadcast multiply-adds instead.
    acc = x[:, 0:1] * w1_ref[0:1, :]                # [TB,1] * [1,Hp] -> [TB,Hp]
    for k in range(1, obs):
        acc = acc + x[:, k:k + 1] * w1_ref[k:k + 1, :]
    h = jnp.maximum(acc + b1_ref[...], 0.0)         # bias + ReLU

    # fc2 on the MXU: [TB,128] @ [128,128] (lane-dense output slab).
    y = jnp.dot(h, w2_ref[...], preferred_element_type=jnp.float32) + b2_ref[...]
    out_ref[...] = y.astype(out_ref.dtype)


def net_forward(x, w1p, b1p, w2p, b2p):
    """x: [B, OBS] float32.  Params are the padded [in, out] arrays from
    init_params.  Returns [B, ALL_ACTIONS] (padding rows/cols sliced off)."""
    B, obs = x.shape

    # Pad batch to a multiple of 8 sublanes, then to a multiple of the row tile.
    bp = max(8, _round_up(B, 8))
    tb = min(bp, MAX_TILE_B)
    bp = _round_up(bp, tb)
    xp = jnp.zeros((bp, obs), x.dtype).at[:B].set(x)

    grid = (bp // tb,)
    out_padded = pl.pallas_call(
        _net_kernel,
        out_shape=jax.ShapeDtypeStruct((bp, ACT_PAD), jnp.float32),
        grid=grid,
        in_specs=[
            pl.BlockSpec((tb, obs), lambda i: (i, 0)),       # x row tile
            pl.BlockSpec(w1p.shape, lambda i: (0, 0)),       # full W1
            pl.BlockSpec(b1p.shape, lambda i: (0, 0)),       # full b1
            pl.BlockSpec(w2p.shape, lambda i: (0, 0)),       # full W2
            pl.BlockSpec(b2p.shape, lambda i: (0, 0)),       # full b2
        ],
        out_specs=pl.BlockSpec((tb, ACT_PAD), lambda i: (i, 0)),
        compiler_params=pltpu.CompilerParams(
            dimension_semantics=("parallel",)),              # v7x: rows split across TCs
    )(xp, w1p, b1p, w2p, b2p)

    return out_padded[:B, :ALL_ACTIONS]


def init_params(key):
    """Parameter init matching the PyTorch module, stored padded & transposed.

    PyTorch: fc1.weight ~ N(0, 0.1) shape [50, OBS]; out.weight ~ N(0, 0.1)
    shape [A, 50]; biases default nn.Linear U(-1/sqrt(fan_in), 1/sqrt(fan_in)).
    Here weights are [in, out] and zero-padded to (HIDDEN_PAD, ACT_PAD) so the
    padded hidden units / action columns contribute exactly zero.
    """
    k1, k2, k3, k4 = jax.random.split(key, 4)

    w1_real = 0.1 * jax.random.normal(k1, (OBSERVE_STATES, HIDDEN), jnp.float32)
    w2_real = 0.1 * jax.random.normal(k2, (HIDDEN, ALL_ACTIONS), jnp.float32)
    bound1 = 1.0 / jnp.sqrt(jnp.float32(OBSERVE_STATES))
    bound2 = 1.0 / jnp.sqrt(jnp.float32(HIDDEN))
    b1_real = jax.random.uniform(k3, (HIDDEN,), jnp.float32, -bound1, bound1)
    b2_real = jax.random.uniform(k4, (ALL_ACTIONS,), jnp.float32, -bound2, bound2)

    w1p = jnp.zeros((OBSERVE_STATES, HIDDEN_PAD), jnp.float32).at[:, :HIDDEN].set(w1_real)
    b1p = jnp.zeros((1, HIDDEN_PAD), jnp.float32).at[0, :HIDDEN].set(b1_real)
    w2p = jnp.zeros((HIDDEN_PAD, ACT_PAD), jnp.float32).at[:HIDDEN, :ALL_ACTIONS].set(w2_real)
    b2p = jnp.zeros((1, ACT_PAD), jnp.float32).at[0, :ALL_ACTIONS].set(b2_real)
    return w1p, b1p, w2p, b2p


if __name__ == "__main__":
    key = jax.random.PRNGKey(0)
    kx, kp = jax.random.split(key)
    x = jax.random.normal(kx, (BATCH, OBSERVE_STATES), jnp.float32)
    w1p, b1p, w2p, b2p = init_params(kp)

    out = net_forward(x, w1p, b1p, w2p, b2p)
    out = jax.block_until_ready(out)

    # Reference check in plain JAX using only the REAL (unpadded) weights,
    # i.e. exactly the PyTorch forward semantics.
    w1 = w1p[:, :HIDDEN]
    b1 = b1p[0, :HIDDEN]
    w2 = w2p[:HIDDEN, :ALL_ACTIONS]
    b2 = b2p[0, :ALL_ACTIONS]
    ref = jnp.maximum(x @ w1 + b1, 0.0) @ w2 + b2

    assert out.shape == (BATCH, ALL_ACTIONS)
    assert jnp.allclose(out, ref, atol=1e-5), "mismatch vs reference"

    print("KERNEL_OK")
</pallas_src>

<mosaic_0001>
module attributes {stable_mosaic.version = 11 : i64} {
  func.func @_net_kernel(%arg0: i32, %arg1: memref<32x4xf32, #tpu.memory_space<vmem>>, %arg2: memref<4x128xf32, #tpu.memory_space<vmem>>, %arg3: memref<1x128xf32, #tpu.memory_space<vmem>>, %arg4: memref<128x128xf32, #tpu.memory_space<vmem>>, %arg5: memref<1x128xf32, #tpu.memory_space<vmem>>, %arg6: memref<32x128xf32, #tpu.memory_space<vmem>>) attributes {dimension_semantics = [#tpu.dimension_semantics<parallel>], iteration_bounds = array<i64: 1>, scalar_prefetch = 0 : i64, scratch_operands = 0 : i64, tpu.core_type = #tpu.core_type<tc>, window_params = [{transform_indices = @transform_0, window_bounds = array<i64: 32, 4>}, {pipeline_mode = #tpu.pipeline_mode<synchronous>, transform_indices = @transform_1, window_bounds = array<i64: 4, 128>}, {pipeline_mode = #tpu.pipeline_mode<synchronous>, transform_indices = @transform_2, window_bounds = array<i64: 1, 128>}, {pipeline_mode = #tpu.pipeline_mode<synchronous>, transform_indices = @transform_3, window_bounds = array<i64: 128, 128>}, {pipeline_mode = #tpu.pipeline_mode<synchronous>, transform_indices = @transform_4, window_bounds = array<i64: 1, 128>}, {transform_indices = @transform_5, window_bounds = array<i64: 32, 128>}]} {
    %c0 = arith.constant 0 : index
    %c0_0 = arith.constant 0 : index
    %0 = vector.load %arg1[%c0, %c0_0] : memref<32x4xf32, #tpu.memory_space<vmem>>, vector<32x4xf32>
    %1 = vector.extract_strided_slice %0 {offsets = [0, 0], sizes = [32, 1], strides = [1, 1]} : vector<32x4xf32> to vector<32x1xf32>
    %c0_1 = arith.constant 0 : index
    %c0_2 = arith.constant 0 : index
    %2 = vector.load %arg2[%c0_1, %c0_2] : memref<4x128xf32, #tpu.memory_space<vmem>>, vector<1x128xf32>
    %3 = vector.broadcast %1 : vector<32x1xf32> to vector<32x128xf32>
    %4 = vector.broadcast %2 : vector<1x128xf32> to vector<32x128xf32>
    %5 = arith.mulf %3, %4 : vector<32x128xf32>
    %6 = vector.extract_strided_slice %0 {offsets = [0, 1], sizes = [32, 1], strides = [1, 1]} : vector<32x4xf32> to vector<32x1xf32>
    %c1 = arith.constant 1 : index
    %c0_3 = arith.constant 0 : index
    %7 = vector.load %arg2[%c1, %c0_3] : memref<4x128xf32, #tpu.memory_space<vmem>>, vector<1x128xf32>
    %8 = vector.broadcast %6 : vector<32x1xf32> to vector<32x128xf32>
    %9 = vector.broadcast %7 : vector<1x128xf32> to vector<32x128xf32>
    %10 = arith.mulf %8, %9 : vector<32x128xf32>
    %11 = arith.addf %5, %10 : vector<32x128xf32>
    %12 = vector.extract_strided_slice %0 {offsets = [0, 2], sizes = [32, 1], strides = [1, 1]} : vector<32x4xf32> to vector<32x1xf32>
    %c2 = arith.constant 2 : index
    %c0_4 = arith.constant 0 : index
    %13 = vector.load %arg2[%c2, %c0_4] : memref<4x128xf32, #tpu.memory_space<vmem>>, vector<1x128xf32>
    %14 = vector.broadcast %12 : vector<32x1xf32> to vector<32x128xf32>
    %15 = vector.broadcast %13 : vector<1x128xf32> to vector<32x128xf32>
    %16 = arith.mulf %14, %15 : vector<32x128xf32>
    %17 = arith.addf %11, %16 : vector<32x128xf32>
    %18 = vector.extract_strided_slice %0 {offsets = [0, 3], sizes = [32, 1], strides = [1, 1]} : vector<32x4xf32> to vector<32x1xf32>
    %c3 = arith.constant 3 : index
    %c0_5 = arith.constant 0 : index
    %19 = vector.load %arg2[%c3, %c0_5] : memref<4x128xf32, #tpu.memory_space<vmem>>, vector<1x128xf32>
    %20 = vector.broadcast %18 : vector<32x1xf32> to vector<32x128xf32>
    %21 = vector.broadcast %19 : vector<1x128xf32> to vector<32x128xf32>
    %22 = arith.mulf %20, %21 : vector<32x128xf32>
    %23 = arith.addf %17, %22 : vector<32x128xf32>
    %c0_6 = arith.constant 0 : index
    %c0_7 = arith.constant 0 : index
    %24 = vector.load %arg3[%c0_6, %c0_7] : memref<1x128xf32, #tpu.memory_space<vmem>>, vector<1x128xf32>
    %25 = vector.broadcast %24 : vector<1x128xf32> to vector<32x128xf32>
    %26 = arith.addf %23, %25 : vector<32x128xf32>
    %cst = arith.constant 0.000000e+00 : f32
    %27 = vector.broadcast %cst : f32 to vector<32x128xf32>
    %28 = arith.maximumf %26, %27 : vector<32x128xf32>
    %c0_8 = arith.constant 0 : index
    %c0_9 = arith.constant 0 : index
    %29 = vector.load %arg4[%c0_8, %c0_9] : memref<128x128xf32, #tpu.memory_space<vmem>>, vector<128x128xf32>
    %cst_10 = arith.constant dense<0.000000e+00> : vector<32x128xf32>
    %30 = tpu.matmul %28, %29, %cst_10 {dimension_numbers = #tpu.dot_dimension_numbers<[1], [0], [0], [1], [0, 0, 1, 1], [], []>} : vector<32x128xf32>, vector<128x128xf32>, vector<32x128xf32> -> vector<32x128xf32>
    %c0_11 = arith.constant 0 : index
    %c0_12 = arith.constant 0 : index
    %31 = vector.load %arg5[%c0_11, %c0_12] : memref<1x128xf32, #tpu.memory_space<vmem>>, vector<1x128xf32>
    %32 = vector.broadcast %31 : vector<1x128xf32> to vector<32x128xf32>
    %33 = arith.addf %30, %32 : vector<32x128xf32>
    %c0_13 = arith.constant 0 : index
    %c0_14 = arith.constant 0 : index
    %34 = vector.load %arg6[%c0_13, %c0_14] : memref<32x128xf32, #tpu.memory_space<vmem>>, vector<32x128xf32>
    tpu.vector_store %arg6[%c0_13, %c0_14], %33 {strides = array<i32>} : memref<32x128xf32, #tpu.memory_space<vmem>>, vector<32x128xf32>,
    return
  }
  func.func @transform_0(%arg0: i32) -> (i32, i32) {
    %c0_i32 = arith.constant 0 : i32
    %c0_i32_0 = arith.constant 0 : i32
    return %arg0, %c0_i32 : i32, i32
  }
  func.func @transform_1(%arg0: i32) -> (i32, i32) {
    %c0_i32 = arith.constant 0 : i32
    %c0_i32_0 = arith.constant 0 : i32
    %c0_i32_1 = arith.constant 0 : i32
    return %c0_i32, %c0_i32_0 : i32, i32
  }
  func.func @transform_2(%arg0: i32) -> (i32, i32) {
    %c0_i32 = arith.constant 0 : i32
    %c0_i32_0 = arith.constant 0 : i32
    %c0_i32_1 = arith.constant 0 : i32
    return %c0_i32, %c0_i32_0 : i32, i32
  }
  func.func @transform_3(%arg0: i32) -> (i32, i32) {
    %c0_i32 = arith.constant 0 : i32
    %c0_i32_0 = arith.constant 0 : i32
    %c0_i32_1 = arith.constant 0 : i32
    return %c0_i32, %c0_i32_0 : i32, i32
  }
  func.func @transform_4(%arg0: i32) -> (i32, i32) {
    %c0_i32 = arith.constant 0 : i32
    %c0_i32_0 = arith.constant 0 : i32
    %c0_i32_1 = arith.constant 0 : i32
    return %c0_i32, %c0_i32_0 : i32, i32
  }
  func.func @transform_5(%arg0: i32) -> (i32, i32) {
    %c0_i32 = arith.constant 0 : i32
    %c0_i32_0 = arith.constant 0 : i32
    return %arg0, %c0_i32 : i32, i32
  }
}

</mosaic_0001>

<llo_original>
// kernel: tpu_custom_call.1
$region0: #{tpu_custom_call.1}
  #allocation0 [shape = 'u32[]', space=smem, size = 0x4, offset = 0x4, fixed_abs, tag = 'smem constant byte address 0x4 - core index']
  #allocation1 [shape = 'u32[144,128]{1,0:T(1,128)}', space=vmem, size = 0x12000, scoped, tag = 'internal scratch']
  %s0 = inlined_call_operand.vmem [shape: f32[32,4], index: 0, kind: input, shape index: {}]
  %s1 = inlined_call_operand.vmem [shape: f32[4,128], index: 1, kind: input, shape index: {}]
  %s2 = inlined_call_operand.vmem [shape: f32[1,128], index: 2, kind: input, shape index: {}]
  %s3 = inlined_call_operand.hbm [shape: f32[128,128], index: 3, kind: input, shape index: {}]
  %s4 = inlined_call_operand.vmem [shape: f32[1,128], index: 4, kind: input, shape index: {}]
  %s5 = inlined_call_operand.hbm [shape: f32[32,128], index: 5, kind: output, shape index: {}]
  %s6 = sld [smem:[#allocation0]]
  $region34: #{tpu_custom_call.1} parent=0
    _
  %s8 = ssub.s32 1, %s6
  %s9 = scalar_select 0, %s8, %s6
  $region1: #{tpu_custom_call.1} parent=0
    #allocation2 [shape = 'u8[65536]{0}', space=vmem, size = 0x10000, scoped, tag = 'input window, operand 3, single buffered']
    #allocation3 [shape = 's32[1]{0}', space=sflag, size = 0x4, scoped, tag = 'scoped memory for tpu_custom_call.1']
    #allocation4 [shape = 's32[1]{0}', space=sflag, size = 0x4, scoped, tag = 'scoped memory for tpu_custom_call.1']
    #allocation5 [shape = 'u8[16384]{0}', space=vmem, size = 0x4000, scoped, tag = 'output window, operand 0, single buffered']
    %10 = vsyncpa [#allocation3], 0
    %11 = vsyncpa [#allocation4], 0
    // Predicated region
    $region2: #{tpu_custom_call.1} parent=1 // pred_check
      _
    $region3: #{tpu_custom_call.1} parent=1 // pred_check_branch
      %13 = sbr.rel (0) target = $region5
    $region4: #{tpu_custom_call.1} parent=1 // pred_region
      _
    $region5: #{tpu_custom_call.1} parent=1 // pred_fallthru
      _
    // Predicated region
    $region6: #{tpu_custom_call.1} parent=1 // pred_check
      _
    $region7: #{tpu_custom_call.1} parent=1 // pred_check_branch
      %15 = sbr.rel (0) target = $region9
    $region8: #{tpu_custom_call.1} parent=1 // pred_region
      _
    $region9: #{tpu_custom_call.1} parent=1 // pred_fallthru
      _
    // Predicated region
    $region10: #{tpu_custom_call.1} parent=1 // pred_check
      _
    $region11: #{tpu_custom_call.1} parent=1 // pred_check_branch
      %17 = sbr.rel (0) target = $region13
    $region12: #{tpu_custom_call.1} parent=1 // pred_region
      _
    $region13: #{tpu_custom_call.1} parent=1 // pred_fallthru
      _
    // Predicated region
    $region14: #{tpu_custom_call.1} parent=1 // pred_check
      _
    $region15: #{tpu_custom_call.1} parent=1 // pred_check_branch
      %19 = sbr.rel (0) target = $region17
    $region16: #{tpu_custom_call.1} parent=1 // pred_region
      %s21 = ssub.s32 2048, 2048
      %22 = vsyncadd [#allocation3], %s21
      %s23 = sshll.u32 [#allocation2], 4
      %s24 = int_to_ptr.vmem [resolvable:$true] %s23
      %29 = dma.hbm_to_vmem [thread:$0]  %s3, 2048, %s24, [#allocation3], 128, 128, 8
    $region17: #{tpu_custom_call.1} parent=1 // pred_fallthru
      _
    // Predicated region
    $region18: #{tpu_custom_call.1} parent=1 // pred_check
      _
    $region19: #{tpu_custom_call.1} parent=1 // pred_check_branch
      %31 = sbr.rel (0) target = $region21
    $region20: #{tpu_custom_call.1} parent=1 // pred_region
      _
    $region21: #{tpu_custom_call.1} parent=1 // pred_fallthru
      _
    // Predicated region
    $region22: #{tpu_custom_call.1} parent=1 // pred_check
      _
    $region23: #{tpu_custom_call.1} parent=1 // pred_check_branch
      %33 = sbr.rel (0) target = $region25
    $region24: #{tpu_custom_call.1} parent=1 // pred_region
      %34 = dma.done [#allocation3], 2048
    $region25: #{tpu_custom_call.1} parent=1 // pred_fallthru
      _
    %v35 = vld [vmem:[%s0] sm:$0xff]
    %v36 = vld [vmem:[%s0 + $0x8] sm:$0xff]
    %v37 = vld [vmem:[%s0 + $0x10] sm:$0xff]
    %v38 = vld [vmem:[%s0 + $0x18] sm:$0xff]
    %v39 = vld [vmem:[%s1] sm:$0x1]
    %41 = vset.pattern.permute.xlu0 0
    %42 = vperm.xlu0 %41, %v35
    %v43 = vpop.permute.xlu0 %42
    %46 = vset.pattern.permute.xlu0 0
    %47 = vperm.xlu0 %46, %v36
    %v48 = vpop.permute.xlu0 %47
    %51 = vset.pattern.permute.xlu0 0
    %52 = vperm.xlu0 %51, %v37
    %v53 = vpop.permute.xlu0 %52
    %56 = vset.pattern.permute.xlu0 0
    %57 = vperm.xlu0 %56, %v38
    %v58 = vpop.permute.xlu0 %57
    %v60 = vlaneseq
    %v61 = vshrl.u32 %v60, 7
    %v62 = vsub.s32 0, %v61
    %v63 = vrot.slane %v39, %v62
    %v64 = vmul.f32 %v43, %v63
    %v65 = vmul.f32 %v48, %v63
    %v66 = vmul.f32 %v53, %v63
    %v67 = vmul.f32 %v58, %v63
    %v68 = vld [vmem:[%s1 + $0x1] sm:$0x1]
    %69 = vset.pattern.permute.xlu0 1
    %70 = vperm.xlu0 %69, %v35
    %v71 = vpop.permute.xlu0 %70
    %73 = vset.pattern.permute.xlu0 1
    %74 = vperm.xlu0 %73, %v36
    %v75 = vpop.permute.xlu0 %74
    %77 = vset.pattern.permute.xlu0 1
    %78 = vperm.xlu0 %77, %v37
    %v79 = vpop.permute.xlu0 %78
    %81 = vset.pattern.permute.xlu0 1
    %82 = vperm.xlu0 %81, %v38
    %v83 = vpop.permute.xlu0 %82
    %v85 = vlaneseq
    %v86 = vshrl.u32 %v85, 7
    %v87 = vsub.s32 0, %v86
    %v88 = vrot.slane %v68, %v87
    %v89 = vmul.f32 %v71, %v88
    %v90 = vmul.f32 %v75, %v88
    %v91 = vmul.f32 %v79, %v88
    %v92 = vmul.f32 %v83, %v88
    %v93 = vadd.f32 %v64, %v89
    %v94 = vadd.f32 %v65, %v90
    %v95 = vadd.f32 %v66, %v91
    %v96 = vadd.f32 %v67, %v92
    %v97 = vld [vmem:[%s1 + $0x2] sm:$0x1]
    %98 = vset.pattern.permute.xlu0 2
    %99 = vperm.xlu0 %98, %v35
    %v100 = vpop.permute.xlu0 %99
    %102 = vset.pattern.permute.xlu0 2
    %103 = vperm.xlu0 %102, %v36
    %v104 = vpop.permute.xlu0 %103
    %106 = vset.pattern.permute.xlu0 2
    %107 = vperm.xlu0 %106, %v37
    %v108 = vpop.permute.xlu0 %107
    %110 = vset.pattern.permute.xlu0 2
    %111 = vperm.xlu0 %110, %v38
    %v112 = vpop.permute.xlu0 %111
    %v114 = vlaneseq
    %v115 = vshrl.u32 %v114, 7
    %v116 = vsub.s32 0, %v115
    %v117 = vrot.slane %v97, %v116
    %v118 = vmul.f32 %v100, %v117
    %v119 = vmul.f32 %v104, %v117
    %v120 = vmul.f32 %v108, %v117
    %v121 = vmul.f32 %v112, %v117
    %v122 = vadd.f32 %v93, %v118
    %v123 = vadd.f32 %v94, %v119
    %v124 = vadd.f32 %v95, %v120
    %v125 = vadd.f32 %v96, %v121
    %v126 = vld [vmem:[%s1 + $0x3] sm:$0x1]
    %127 = vset.pattern.permute.xlu0 3
    %128 = vperm.xlu0 %127, %v35
    %v129 = vpop.permute.xlu0 %128
    %131 = vset.pattern.permute.xlu0 3
    %132 = vperm.xlu0 %131, %v36
    %v133 = vpop.permute.xlu0 %132
    %135 = vset.pattern.permute.xlu0 3
    %136 = vperm.xlu0 %135, %v37
    %v137 = vpop.permute.xlu0 %136
    %139 = vset.pattern.permute.xlu0 3
    %140 = vperm.xlu0 %139, %v38
    %v141 = vpop.permute.xlu0 %140
    %v143 = vlaneseq
    %v144 = vshrl.u32 %v143, 7
    %v145 = vsub.s32 0, %v144
    %v146 = vrot.slane %v126, %v145
    %v147 = vmul.f32 %v129, %v146
    %v148 = vmul.f32 %v133, %v146
    %v149 = vmul.f32 %v137, %v146
    %v150 = vmul.f32 %v141, %v146
    %v151 = vadd.f32 %v122, %v147
    %v152 = vadd.f32 %v123, %v148
    %v153 = vadd.f32 %v124, %v149
    %v154 = vadd.f32 %v125, %v150
    %v155 = vld [vmem:[%s2] sm:$0x1]
    %v157 = vlaneseq
    %v158 = vshrl.u32 %v157, 7
    %v159 = vsub.s32 0, %v158
    %v160 = vrot.slane %v155, %v159
    %v162 = vadd.f32 %v151, %v160
    %v163 = vadd.f32 %v152, %v160
    %v164 = vadd.f32 %v153, %v160
    %v165 = vadd.f32 %v154, %v160
    %v166 = vmax.f32 %v162, 0.0
    %v167 = vmax.f32 %v163, 0.0
    %v168 = vmax.f32 %v164, 0.0
    %v169 = vmax.f32 %v165, 0.0
    %v170 = vld [vmem:[#allocation2] sm:$0xff]
    %v171 = vld [vmem:[#allocation2 + $0x8] sm:$0xff]
    %v172 = vld [vmem:[#allocation2 + $0x10] sm:$0xff]
    %v173 = vld [vmem:[#allocation2 + $0x18] sm:$0xff]
    %v174 = vld [vmem:[#allocation2 + $0x20] sm:$0xff]
    %v175 = vld [vmem:[#allocation2 + $0x28] sm:$0xff]
    %v176 = vld [vmem:[#allocation2 + $0x30] sm:$0xff]
    %v177 = vld [vmem:[#allocation2 + $0x38] sm:$0xff]
    %v178 = vld [vmem:[#allocation2 + $0x40] sm:$0xff]
    %v179 = vld [vmem:[#allocation2 + $0x48] sm:$0xff]
    %v180 = vld [vmem:[#allocation2 + $0x50] sm:$0xff]
    %v181 = vld [vmem:[#allocation2 + $0x58] sm:$0xff]
    %v182 = vld [vmem:[#allocation2 + $0x60] sm:$0xff]
    %v183 = vld [vmem:[#allocation2 + $0x68] sm:$0xff]
    %v184 = vld [vmem:[#allocation2 + $0x70] sm:$0xff]
    %v185 = vld [vmem:[#allocation2 + $0x78] sm:$0xff]
    %v186 = vld [vmem:[%s4] sm:$0x1]
    %v188 = vlaneseq
    %v189 = vshrl.u32 %v188, 7
    %v190 = vsub.s32 0, %v189
    %v191 = vrot.slane %v186, %v190
    %193 = vmatprep.subr.mxu0 0.0
    %194 = vmatpush1.msra.mxu0 %v185
    %195 = vmatprep.subr.mxu0 0.0
    %196 = vmatpush1.msra.mxu0 %v184
    %197 = vmatprep.subr.mxu0 0.0
    %198 = vmatpush1.msra.mxu0 %v183
    %199 = vmatprep.subr.mxu0 0.0
    %200 = vmatpush1.msra.mxu0 %v182
    %201 = vmatprep.subr.mxu0 0.0
    %202 = vmatpush1.msra.mxu0 %v181
    %203 = vmatprep.subr.mxu0 0.0
    %204 = vmatpush1.msra.mxu0 %v180
    %205 = vmatprep.subr.mxu0 0.0
    %206 = vmatpush1.msra.mxu0 %v179
    %207 = vmatprep.subr.mxu0 0.0
    %208 = vmatpush1.msra.mxu0 %v178
    %209 = vmatprep.subr.mxu0 0.0
    %210 = vmatpush1.msra.mxu0 %v177
    %211 = vmatprep.subr.mxu0 0.0
    %212 = vmatpush1.msra.mxu0 %v176
    %213 = vmatprep.subr.mxu0 0.0
    %214 = vmatpush1.msra.mxu0 %v175
    %215 = vmatprep.subr.mxu0 0.0
    %216 = vmatpush1.msra.mxu0 %v174
    %217 = vmatprep.subr.mxu0 0.0
    %218 = vmatpush1.msra.mxu0 %v173
    %219 = vmatprep.subr.mxu0 0.0
    %220 = vmatpush1.msra.mxu0 %v172
    %221 = vmatprep.subr.mxu0 0.0
    %222 = vmatpush1.msra.mxu0 %v171
    %223 = vmatprep.subr.mxu0 0.0
    %224 = vmatpush1.msra.mxu0 %v170
    %225 = vmatprep.subr.mxu0 0.0
    %226 = vmatpush2.msra.mxu0 0.0
    %227 = vmatprep.subr.mxu0 0.0
    %228 = vmatpush2.msra.mxu0 0.0
    %229 = vmatprep.subr.mxu0 0.0
    %230 = vmatpush2.msra.mxu0 0.0
    %231 = vmatprep.subr.mxu0 0.0
    %232 = vmatpush2.msra.mxu0 0.0
    %233 = vmatprep.subr.mxu0 0.0
    %234 = vmatpush2.msra.mxu0 0.0
    %235 = vmatprep.subr.mxu0 0.0
    %236 = vmatpush2.msra.mxu0 0.0
    %237 = vmatprep.subr.mxu0 0.0
    %238 = vmatpush2.msra.mxu0 0.0
    %239 = vmatprep.subr.mxu0 0.0
    %240 = vmatpush2.msra.mxu0 0.0
    %241 = vmatprep.subr.mxu0 0.0
    %242 = vmatpush2.msra.mxu0 0.0
    %243 = vmatprep.subr.mxu0 0.0
    %244 = vmatpush2.msra.mxu0 0.0
    %245 = vmatprep.subr.mxu0 0.0
    %246 = vmatpush2.msra.mxu0 0.0
    %247 = vmatprep.subr.mxu0 0.0
    %248 = vmatpush2.msra.mxu0 0.0
    %249 = vmatprep.subr.mxu0 0.0
    %250 = vmatpush2.msra.mxu0 0.0
    %251 = vmatprep.subr.mxu0 0.0
    %252 = vmatpush2.msra.mxu0 0.0
    %253 = vmatprep.subr.mxu0 0.0
    %254 = vmatpush2.msra.mxu0 0.0
    %255 = vmatprep.subr.mxu0 0.0
    %256 = vmatpush2.msra.mxu0 0.0
    %257 = vmatprep.mubr.f32.mxu0 0.0
    %258 = vmatmul.mubr.f32.gmra.mxu0 %v166
    %v259 = vpop.f32.mrf.mxu0
    %v260 = vadd.f32 %v191, %v259
    %v261 = vpop.f32.mrf.mxu0
    %262 = vmatprep.mubr.f32.mxu0 0.0
    %263 = vmatmul.mubr.f32.gmra.mxu0 %v167
    %v264 = vpop.f32.mrf.mxu0
    %v265 = vadd.f32 %v191, %v264
    %v266 = vpop.f32.mrf.mxu0
    %267 = vmatprep.mubr.f32.mxu0 0.0
    %268 = vmatmul.mubr.f32.gmra.mxu0 %v168
    %v269 = vpop.f32.mrf.mxu0
    %v270 = vadd.f32 %v191, %v269
    %v271 = vpop.f32.mrf.mxu0
    %272 = vmatprep.mubr.f32.mxu0 0.0
    %273 = vmatmul.mubr.f32.gmra.mxu0 %v169
    %v274 = vpop.f32.mrf.mxu0
    %v275 = vadd.f32 %v191, %v274
    %v276 = vpop.f32.mrf.mxu0
    %277 = vdwg.mxu0
    %278 = vst [vmem:[#allocation5] sm:$0xff] %v260
    %279 = vst [vmem:[#allocation5 + $0x8] sm:$0xff] %v265
    %280 = vst [vmem:[#allocation5 + $0x10] sm:$0xff] %v270
    %281 = vst [vmem:[#allocation5 + $0x18] sm:$0xff] %v275
    // Predicated region
    $region26: #{tpu_custom_call.1} parent=1 // pred_check
      _
    $region27: #{tpu_custom_call.1} parent=1 // pred_check_branch
      %283 = sbr.rel (0) target = $region29
    $region28: #{tpu_custom_call.1} parent=1 // pred_region
      %s285 = ssub.s32 512, 512
      %286 = vsyncadd [#allocation4], %s285
      %s287 = sshll.u32 [#allocation5], 4
      %s288 = int_to_ptr.vmem [resolvable:$true] %s287
      %293 = dma.vmem_to_hbm [thread:$0]  %s288, 512, %s5, [#allocation4], 128, 128, 8
    $region29: #{tpu_custom_call.1} parent=1 // pred_fallthru
      _
    // Predicated region
    $region30: #{tpu_custom_call.1} parent=1 // pred_check
      _
    $region31: #{tpu_custom_call.1} parent=1 // pred_check_branch
      %295 = sbr.rel (0) target = $region33
    $region32: #{tpu_custom_call.1} parent=1 // pred_region
      %296 = dma.done [#allocation4], 512
    $region33: #{tpu_custom_call.1} parent=1 // pred_fallthru
      _
    %297 = vsyncpa [#allocation3], 1
    %298 = vsyncpa [#allocation4], 1

</llo_original>
